<compile_context>
chip_gen: v6e
topology: v6e:2x2x1
jax: 0.10.0
libtpu: 0.0.40
codegen_flags: <defaults>
</compile_context>

<pallas_src>
import functools

import jax
import jax.numpy as jnp
from jax.experimental import pallas as pl
from jax.experimental.pallas import tpu as pltpu

LN_EPS = 1e-5
VMEM_LIMIT = 48 * 1024 * 1024   # safe on v5e/v6e (128 MiB) and v7x (64 MiB)


def _round_up(x, m):
    return (x + m - 1) // m * m


# ---------------------------------------------------------------------------
# In-kernel helpers (traced into kernel bodies)
# ---------------------------------------------------------------------------
def _ln_relu(y, g, be):
    """LayerNorm (f32) + affine + ReLU."""
    mean = jnp.mean(y, axis=-1, keepdims=True)
    var = jnp.mean(jnp.square(y - mean), axis=-1, keepdims=True)
    y = (y - mean) * jax.lax.rsqrt(var + LN_EPS)
    return jnp.maximum(y * g + be, 0.0)


def _apply_layers(h, vals, has_ln):
    """Chain of Linear(+LN+ReLU) layers. Weights bf16, math in f32."""
    idx = 0
    for ln in has_ln:
        w = vals[idx]
        b = vals[idx + 1]
        idx += 2
        y = jnp.dot(h.astype(jnp.bfloat16), w,
                    preferred_element_type=jnp.float32) + b
        if ln:
            g = vals[idx]
            be = vals[idx + 1]
            idx += 2
            y = _ln_relu(y, g, be)
        h = y
    return h


# ---------------------------------------------------------------------------
# Kernel 1: fused multi-layer MLP (encoder / decoder / node-MLP+residual)
#   row-tiled, "parallel" grid; weights resident in VMEM
# ---------------------------------------------------------------------------
def _mlp_kernel(*refs, has_ln, final_sigmoid, has_residual):
    o_ref = refs[-1]
    if has_residual:
        x_ref, r_ref = refs[0], refs[1]
        vals = [r[...] for r in refs[2:-1]]
        h = x_ref[...].astype(jnp.float32) + r_ref[...].astype(jnp.float32)
    else:
        x_ref = refs[0]
        vals = [r[...] for r in refs[1:-1]]
        h = x_ref[...].astype(jnp.float32)
    h = _apply_layers(h, vals, has_ln)
    if final_sigmoid:
        h = jax.nn.sigmoid(h)
    o_ref[...] = h.astype(o_ref.dtype)


def mlp_forward(layers, x, *, residual=None, final_sigmoid=False,
                pad_out_to=None, row_tile=None, out_dtype=jnp.bfloat16):
    n_rows, din = x.shape
    flat, has_ln = [], []
    for i, p in enumerate(layers):
        w, b = p["w"], p["b"]
        if pad_out_to is not None and i == len(layers) - 1:
            assert not p["ln"], "only pad LN-free final layers"
            extra = pad_out_to - w.shape[1]
            assert extra >= 0
            w = jnp.pad(w, ((0, 0), (0, extra)))
            b = jnp.pad(b, ((0, 0), (0, extra)))
        flat += [w, b]
        has_ln.append(p["ln"])
        if p["ln"]:
            flat += [p["g"], p["be"]]
    dout = pad_out_to if pad_out_to is not None else layers[-1]["w"].shape[1]

    tr = row_tile or n_rows
    assert n_rows % tr == 0
    n_tiles = n_rows // tr

    in_specs = [pl.BlockSpec((tr, din), lambda i: (i, 0))]
    inputs = [x]
    if residual is not None:
        in_specs.append(pl.BlockSpec((tr, din), lambda i: (i, 0)))
        inputs.append(residual)
    for a in flat:
        in_specs.append(pl.BlockSpec(a.shape, lambda i: (0, 0)))
    inputs += flat

    kernel = functools.partial(_mlp_kernel, has_ln=tuple(has_ln),
                               final_sigmoid=final_sigmoid,
                               has_residual=residual is not None)
    return pl.pallas_call(
        kernel,
        grid=(n_tiles,),
        in_specs=in_specs,
        out_specs=pl.BlockSpec((tr, dout), lambda i: (i, 0)),
        out_shape=jax.ShapeDtypeStruct((n_rows, dout), out_dtype),
        compiler_params=pltpu.CompilerParams(
            dimension_semantics=("parallel",),
            vmem_limit_bytes=VMEM_LIMIT),
    )(*inputs)


# ---------------------------------------------------------------------------
# Probe: does the Mosaic backend support an in-kernel dynamic row gather
# (jnp.take along the sublane axis) at these shapes?  Compile + numeric check.
# ---------------------------------------------------------------------------
_TAKE_CACHE = {}


def _take_gather_supported(np_, h_dim, te):
    key = (np_, h_dim, te)
    if key not in _TAKE_CACHE:
        def probe_kernel(idx_ref, x_ref, o_ref):
            ids = jnp.minimum(idx_ref[...][0], np_ - 1)
            o_ref[...] = jnp.take(x_ref[...], ids, axis=0, mode="clip")

        try:
            idx = ((jnp.arange(te, dtype=jnp.int32) * 7 + 3) % np_)
            xv = (jnp.arange(np_ * h_dim, dtype=jnp.float32)
                  .reshape(np_, h_dim) % 251.0).astype(jnp.bfloat16)
            got = pl.pallas_call(
                probe_kernel,
                out_shape=jax.ShapeDtypeStruct((te, h_dim), jnp.bfloat16),
            )(idx.reshape(1, te), xv)
            want = jnp.take(xv, idx, axis=0)
            ok = bool(jnp.array_equal(jax.block_until_ready(got), want))
        except Exception:   # lowering / runtime unsupported -> one-hot fallback
            ok = False
        _TAKE_CACHE[key] = ok
    return _TAKE_CACHE[key]


# ---------------------------------------------------------------------------
# Kernel 2: fused GIN edge step
#   row-gather x_i/x_j -> edge MLP -> scatter-add onto dst
#   grid: edge tiles ("arbitrary" reduction); output block IS the accumulator
# ---------------------------------------------------------------------------
def _edge_agg_kernel(*refs, use_take, edge_has_ln):
    nv_ref = refs[0]                         # scalar-prefetch: valid edges/tile
    src_ref, dst_ref, x_ref = refs[1], refs[2], refs[3]
    edge_refs = refs[4:-1]
    agg_ref = refs[-1]                       # (Np, H) f32 accumulator (output)

    step = pl.program_id(0)
    np_, _ = x_ref.shape
    te = src_ref.shape[1]

    @pl.when(step == 0)
    def _init():
        agg_ref[...] = jnp.zeros_like(agg_ref)

    @pl.when(nv_ref[step] > 0)               # skip tiles that are all padding
    def _accumulate():
        x_bf = x_ref[...]                    # (Np, H) bf16, resident
        src_row = src_ref[...]               # (1, TE) int32 (sentinel = Np)
        dst_row = dst_ref[...]

        # single one-hot, used for the scatter (and gathers in fallback mode);
        # padded edges (index == Np) match no row -> contribute nothing.
        node_ids = jax.lax.broadcasted_iota(jnp.int32, (np_, te), 0)
        dst_oh = (node_ids == dst_row).astype(jnp.bfloat16)        # (Np, TE)

        if use_take:
            gi = jnp.minimum(dst_row[0], np_ - 1)    # clamp sentinel in-range
            gj = jnp.minimum(src_row[0], np_ - 1)
            x_i = jnp.take(x_bf, gi, axis=0, mode="clip")          # (TE, H)
            x_j = jnp.take(x_bf, gj, axis=0, mode="clip")
        else:
            src_oh = (node_ids == src_row).astype(jnp.bfloat16)
            dn = (((0,), (0,)), ((), ()))            # contract node axis
            x_i = jax.lax.dot_general(
                dst_oh, x_bf, dn,
                preferred_element_type=jnp.float32).astype(jnp.bfloat16)
            x_j = jax.lax.dot_general(
                src_oh, x_bf, dn,
                preferred_element_type=jnp.float32).astype(jnp.bfloat16)

        # edge MLP; first layer = cat([x_i, x_j]) @ W1 done as split matmuls
        evals = [r[...] for r in edge_refs]
        w1a, w1b, b1, g1, be1 = evals[:5]
        h = (jnp.dot(x_i, w1a, preferred_element_type=jnp.float32)
             + jnp.dot(x_j, w1b, preferred_element_type=jnp.float32)
             + b1)
        h = _ln_relu(h, g1, be1)
        h = _apply_layers(h, evals[5:], edge_has_ln)
        msgs = h.astype(jnp.bfloat16)                               # (TE, H)

        # scatter-add messages onto target nodes (sum aggregation)
        agg_ref[...] += jnp.dot(dst_oh, msgs,
                                preferred_element_type=jnp.float32)


def gin_edge_aggregate(conv_params, x_bf, src_row, dst_row, tile_valid, te):
    np_, h_dim = x_bf.shape
    e_pad = src_row.shape[1]
    assert e_pad % te == 0
    n_tiles = e_pad // te

    edge_layers = conv_params["edge_mlp"]
    # pre-split first edge-layer weight -> avoids the in-kernel concat
    w1 = edge_layers[0]["w"]                                 # (2H, D1) bf16
    edge_flat = [w1[:h_dim], w1[h_dim:], edge_layers[0]["b"],
                 edge_layers[0]["g"], edge_layers[0]["be"]]
    edge_has_ln = []
    for p in edge_layers[1:]:
        edge_flat += [p["w"], p["b"], p["g"], p["be"]]
        edge_has_ln.append(True)

    use_take = _take_gather_supported(np_, h_dim, te)

    kernel = functools.partial(_edge_agg_kernel, use_take=use_take,
                               edge_has_ln=tuple(edge_has_ln))
    grid_spec = pltpu.PrefetchScalarGridSpec(
        num_scalar_prefetch=1,
        grid=(n_tiles,),
        in_specs=[pl.BlockSpec((1, te), lambda i, nv: (0, i)),
                  pl.BlockSpec((1, te), lambda i, nv: (0, i)),
                  pl.BlockSpec((np_, h_dim), lambda i, nv: (0, 0))]
                 + [pl.BlockSpec(a.shape, lambda i, nv: (0, 0))
                    for a in edge_flat],
        out_specs=pl.BlockSpec((np_, h_dim), lambda i, nv: (0, 0)),
    )
    return pl.pallas_call(
        kernel,
        grid_spec=grid_spec,
        out_shape=jax.ShapeDtypeStruct((np_, h_dim), jnp.float32),
        compiler_params=pltpu.CompilerParams(
            dimension_semantics=("arbitrary",),
            vmem_limit_bytes=VMEM_LIMIT),
    )(tile_valid, src_row, dst_row, x_bf, *edge_flat)


# ---------------------------------------------------------------------------
# Parameter construction (deterministic, in-script). Weights bf16, LN/bias f32.
# ---------------------------------------------------------------------------
def init_mlp(key, input_dim, hidden_dim, mlp_depth, output_dim, last_relu):
    """Mirrors CoReGD.get_mlp: (Linear+LN+ReLU+Drop) x (1+mlp_depth), then
    Linear (+LN+ReLU if last_relu). Dropout p=0 => identity."""
    dims = [input_dim] + [hidden_dim] * (mlp_depth + 1) + [output_dim]
    layers = []
    for i in range(len(dims) - 1):
        key, kw, kb = jax.random.split(key, 3)
        din, dout = dims[i], dims[i + 1]
        w = (jax.random.normal(kw, (din, dout), jnp.float32)
             / jnp.sqrt(float(din))).astype(jnp.bfloat16)
        b = 0.01 * jax.random.normal(kb, (1, dout), jnp.float32)
        is_last = i == len(dims) - 2
        has_ln = (not is_last) or last_relu
        layer = {"w": w, "b": b, "ln": has_ln}
        if has_ln:
            layer["g"] = jnp.ones((1, dout), jnp.float32)    # LN weight
            layer["be"] = jnp.zeros((1, dout), jnp.float32)  # LN bias
        layers.append(layer)
    return layers


def init_coregd_params(key, in_channels, hidden_channels, out_channels,
                       hidden_state_factor, mlp_depth, overlay_freq):
    k_enc, k_dec, *k_convs = jax.random.split(key, 2 + overlay_freq)
    params = {
        "encoder": init_mlp(k_enc, in_channels,
                            hidden_state_factor * hidden_channels,
                            mlp_depth, hidden_channels, last_relu=True),
        "decoder": init_mlp(k_dec, hidden_channels,
                            hidden_state_factor * hidden_channels,
                            mlp_depth, out_channels, last_relu=False),
        "convs": [],
        "out_channels": out_channels,
    }
    for kc in k_convs:
        kn, ke = jax.random.split(kc)
        params["convs"].append({
            "node_mlp": init_mlp(kn, hidden_channels,
                                 hidden_state_factor * hidden_channels,
                                 mlp_depth, hidden_channels, last_relu=True),
            "edge_mlp": init_mlp(ke, 2 * hidden_channels,
                                 hidden_state_factor * 2 * hidden_channels,
                                 mlp_depth, hidden_channels, last_relu=True),
        })
    return params


# ---------------------------------------------------------------------------
# CoReGD forward
# ---------------------------------------------------------------------------
def coregd_forward(params, x, edge_index, iterations):
    n, _ = x.shape
    out_cols = params["out_channels"]

    # --- node rows: pick large row tiles (mem-bound MLP roofline) ------------
    if n >= 2048:
        row_tile = 1024
    elif n >= 512:
        row_tile = 512
    elif n >= 256:
        row_tile = 256
    else:
        row_tile = None
    n_pad = _round_up(n, row_tile if row_tile else 8)
    x_p = jnp.pad(x, ((0, n_pad - n), (0, 0)))

    # --- edge tiling: big tiles, capped so the (Np, TE) scatter mask + iota
    #     internal scratch stays well inside v7x's 64 MiB VMEM -----------------
    e = edge_index.shape[1]
    if e > 8192:
        te = 2048
    elif e > 2048:
        te = 1024
    elif e > 512:
        te = 512
    else:
        te = _round_up(max(e, 1), 128)
    mask_cap = max(128, ((8 * 1024 * 1024) // (6 * n_pad)) // 128 * 128)
    te = min(te, mask_cap)
    e_pad = _round_up(e, te)
    n_etiles = e_pad // te

    # lane-dense (1, E) int32 index rows; sentinel index n_pad matches no node
    src = jnp.pad(edge_index[0].astype(jnp.int32), (0, e_pad - e),
                  constant_values=n_pad)
    dst = jnp.pad(edge_index[1].astype(jnp.int32), (0, e_pad - e),
                  constant_values=n_pad)
    src_row = src.reshape(1, e_pad)
    dst_row = dst.reshape(1, e_pad)
    # per-tile valid-edge counts (scalar prefetch -> skip all-padding tiles)
    tile_valid = jnp.minimum(
        jnp.maximum(e - jnp.arange(n_etiles, dtype=jnp.int32) * te, 0),
        te).astype(jnp.int32)

    # encode=True path: x_orig = x; x = encoder(x).  h is carried bf16.
    h = mlp_forward(params["encoder"], x_p, row_tile=row_tile,
                    out_dtype=jnp.bfloat16)

    # With overlay='none', skip_input=None, skip_prev=None the intermediate
    # pos = sigmoid(decoder(x)).detach() has no effect on the output -> elided.
    for _ in range(iterations):
        for conv in params["convs"]:
            agg = gin_edge_aggregate(conv, h, src_row, dst_row, tile_valid, te)
            h = mlp_forward(conv["node_mlp"], h, residual=agg,
                            row_tile=row_tile, out_dtype=jnp.bfloat16)

    # x = sigmoid(decoder(x)) -> lane-dense padded slab, sliced in the wrapper
    out_pad = mlp_forward(params["decoder"], h, final_sigmoid=True,
                          pad_out_to=_round_up(out_cols, 128),
                          row_tile=row_tile, out_dtype=jnp.float32)
    return out_pad[:n, :out_cols]


# ---------------------------------------------------------------------------
if __name__ == "__main__":
    IN_CHANNELS = 4
    HIDDEN_CHANNELS = 32
    OUT_CHANNELS = 2
    HIDDEN_STATE_FACTOR = 2
    MLP_DEPTH = 2
    OVERLAY_FREQ = 1
    N_NODES = 16
    ITERATIONS = 2

    key = jax.random.PRNGKey(0)
    k_param, k_x = jax.random.split(key)

    params = init_coregd_params(k_param, IN_CHANNELS, HIDDEN_CHANNELS,
                                OUT_CHANNELS, HIDDEN_STATE_FACTOR,
                                MLP_DEPTH, OVERLAY_FREQ)

    x = jax.random.normal(k_x, (N_NODES, IN_CHANNELS), jnp.float32)

    # undirected ring graph: (i -> i+1) and (i+1 -> i) for every node
    src_l, dst_l = [], []
    for i in range(N_NODES):
        j = (i + 1) % N_NODES
        src_l += [i, j]
        dst_l += [j, i]
    edge_index = jnp.array([src_l, dst_l], dtype=jnp.int32)   # (2, 32)

    out = coregd_forward(params, x, edge_index, ITERATIONS)
    out = jax.block_until_ready(out)

    assert out.shape == (N_NODES, OUT_CHANNELS)
    assert bool(jnp.all(jnp.isfinite(out)))
    assert bool(jnp.all((out >= 0.0) & (out <= 1.0)))   # sigmoid output range
    print("KERNEL_OK")
</pallas_src>

<mosaic_0001>
module attributes {stable_mosaic.version = 11 : i64} {
  func.func @_mlp_kernel(%arg0: i32, %arg1: memref<16x4xf32, #tpu.memory_space<vmem>>, %arg2: memref<4x64xbf16, #tpu.memory_space<vmem>>, %arg3: memref<1x64xf32, #tpu.memory_space<vmem>>, %arg4: memref<1x64xf32, #tpu.memory_space<vmem>>, %arg5: memref<1x64xf32, #tpu.memory_space<vmem>>, %arg6: memref<64x64xbf16, #tpu.memory_space<vmem>>, %arg7: memref<1x64xf32, #tpu.memory_space<vmem>>, %arg8: memref<1x64xf32, #tpu.memory_space<vmem>>, %arg9: memref<1x64xf32, #tpu.memory_space<vmem>>, %arg10: memref<64x64xbf16, #tpu.memory_space<vmem>>, %arg11: memref<1x64xf32, #tpu.memory_space<vmem>>, %arg12: memref<1x64xf32, #tpu.memory_space<vmem>>, %arg13: memref<1x64xf32, #tpu.memory_space<vmem>>, %arg14: memref<64x32xbf16, #tpu.memory_space<vmem>>, %arg15: memref<1x32xf32, #tpu.memory_space<vmem>>, %arg16: memref<1x32xf32, #tpu.memory_space<vmem>>, %arg17: memref<1x32xf32, #tpu.memory_space<vmem>>, %arg18: memref<16x32xbf16, #tpu.memory_space<vmem>>) attributes {dimension_semantics = [#tpu.dimension_semantics<parallel>], iteration_bounds = array<i64: 1>, scalar_prefetch = 0 : i64, scratch_operands = 0 : i64, tpu.core_type = #tpu.core_type<tc>, window_params = [{transform_indices = @transform_0, window_bounds = array<i64: 16, 4>}, {pipeline_mode = #tpu.pipeline_mode<synchronous>, transform_indices = @transform_1, window_bounds = array<i64: 4, 64>}, {pipeline_mode = #tpu.pipeline_mode<synchronous>, transform_indices = @transform_2, window_bounds = array<i64: 1, 64>}, {pipeline_mode = #tpu.pipeline_mode<synchronous>, transform_indices = @transform_3, window_bounds = array<i64: 1, 64>}, {pipeline_mode = #tpu.pipeline_mode<synchronous>, transform_indices = @transform_4, window_bounds = array<i64: 1, 64>}, {pipeline_mode = #tpu.pipeline_mode<synchronous>, transform_indices = @transform_5, window_bounds = array<i64: 64, 64>}, {pipeline_mode = #tpu.pipeline_mode<synchronous>, transform_indices = @transform_6, window_bounds = array<i64: 1, 64>}, {pipeline_mode = #tpu.pipeline_mode<synchronous>, transform_indices = @transform_7, window_bounds = array<i64: 1, 64>}, {pipeline_mode = #tpu.pipeline_mode<synchronous>, transform_indices = @transform_8, window_bounds = array<i64: 1, 64>}, {pipeline_mode = #tpu.pipeline_mode<synchronous>, transform_indices = @transform_9, window_bounds = array<i64: 64, 64>}, {pipeline_mode = #tpu.pipeline_mode<synchronous>, transform_indices = @transform_10, window_bounds = array<i64: 1, 64>}, {pipeline_mode = #tpu.pipeline_mode<synchronous>, transform_indices = @transform_11, window_bounds = array<i64: 1, 64>}, {pipeline_mode = #tpu.pipeline_mode<synchronous>, transform_indices = @transform_12, window_bounds = array<i64: 1, 64>}, {pipeline_mode = #tpu.pipeline_mode<synchronous>, transform_indices = @transform_13, window_bounds = array<i64: 64, 32>}, {pipeline_mode = #tpu.pipeline_mode<synchronous>, transform_indices = @transform_14, window_bounds = array<i64: 1, 32>}, {pipeline_mode = #tpu.pipeline_mode<synchronous>, transform_indices = @transform_15, window_bounds = array<i64: 1, 32>}, {pipeline_mode = #tpu.pipeline_mode<synchronous>, transform_indices = @transform_16, window_bounds = array<i64: 1, 32>}, {transform_indices = @transform_17, window_bounds = array<i64: 16, 32>}]} {
    %c0 = arith.constant 0 : index
    %c0_0 = arith.constant 0 : index
    %0 = vector.load %arg2[%c0, %c0_0] : memref<4x64xbf16, #tpu.memory_space<vmem>>, vector<4x64xbf16>
    %c0_1 = arith.constant 0 : index
    %c0_2 = arith.constant 0 : index
    %1 = vector.load %arg3[%c0_1, %c0_2] : memref<1x64xf32, #tpu.memory_space<vmem>>, vector<1x64xf32>
    %c0_3 = arith.constant 0 : index
    %c0_4 = arith.constant 0 : index
    %2 = vector.load %arg4[%c0_3, %c0_4] : memref<1x64xf32, #tpu.memory_space<vmem>>, vector<1x64xf32>
    %c0_5 = arith.constant 0 : index
    %c0_6 = arith.constant 0 : index
    %3 = vector.load %arg5[%c0_5, %c0_6] : memref<1x64xf32, #tpu.memory_space<vmem>>, vector<1x64xf32>
    %c0_7 = arith.constant 0 : index
    %c0_8 = arith.constant 0 : index
    %4 = vector.load %arg6[%c0_7, %c0_8] : memref<64x64xbf16, #tpu.memory_space<vmem>>, vector<64x64xbf16>
    %c0_9 = arith.constant 0 : index
    %c0_10 = arith.constant 0 : index
    %5 = vector.load %arg7[%c0_9, %c0_10] : memref<1x64xf32, #tpu.memory_space<vmem>>, vector<1x64xf32>
    %c0_11 = arith.constant 0 : index
    %c0_12 = arith.constant 0 : index
    %6 = vector.load %arg8[%c0_11, %c0_12] : memref<1x64xf32, #tpu.memory_space<vmem>>, vector<1x64xf32>
    %c0_13 = arith.constant 0 : index
    %c0_14 = arith.constant 0 : index
    %7 = vector.load %arg9[%c0_13, %c0_14] : memref<1x64xf32, #tpu.memory_space<vmem>>, vector<1x64xf32>
    %c0_15 = arith.constant 0 : index
    %c0_16 = arith.constant 0 : index
    %8 = vector.load %arg10[%c0_15, %c0_16] : memref<64x64xbf16, #tpu.memory_space<vmem>>, vector<64x64xbf16>
    %c0_17 = arith.constant 0 : index
    %c0_18 = arith.constant 0 : index
    %9 = vector.load %arg11[%c0_17, %c0_18] : memref<1x64xf32, #tpu.memory_space<vmem>>, vector<1x64xf32>
    %c0_19 = arith.constant 0 : index
    %c0_20 = arith.constant 0 : index
    %10 = vector.load %arg12[%c0_19, %c0_20] : memref<1x64xf32, #tpu.memory_space<vmem>>, vector<1x64xf32>
    %c0_21 = arith.constant 0 : index
    %c0_22 = arith.constant 0 : index
    %11 = vector.load %arg13[%c0_21, %c0_22] : memref<1x64xf32, #tpu.memory_space<vmem>>, vector<1x64xf32>
    %c0_23 = arith.constant 0 : index
    %c0_24 = arith.constant 0 : index
    %12 = vector.load %arg14[%c0_23, %c0_24] : memref<64x32xbf16, #tpu.memory_space<vmem>>, vector<64x32xbf16>
    %c0_25 = arith.constant 0 : index
    %c0_26 = arith.constant 0 : index
    %13 = vector.load %arg15[%c0_25, %c0_26] : memref<1x32xf32, #tpu.memory_space<vmem>>, vector<1x32xf32>
    %c0_27 = arith.constant 0 : index
    %c0_28 = arith.constant 0 : index
    %14 = vector.load %arg16[%c0_27, %c0_28] : memref<1x32xf32, #tpu.memory_space<vmem>>, vector<1x32xf32>
    %c0_29 = arith.constant 0 : index
    %c0_30 = arith.constant 0 : index
    %15 = vector.load %arg17[%c0_29, %c0_30] : memref<1x32xf32, #tpu.memory_space<vmem>>, vector<1x32xf32>
    %c0_31 = arith.constant 0 : index
    %c0_32 = arith.constant 0 : index
    %16 = vector.load %arg1[%c0_31, %c0_32] : memref<16x4xf32, #tpu.memory_space<vmem>>, vector<16x4xf32>
    %17 = arith.truncf %16 : vector<16x4xf32> to vector<16x4xbf16>
    %cst = arith.constant dense<0.000000e+00> : vector<16x64xf32>
    %18 = tpu.matmul %17, %0, %cst {dimension_numbers = #tpu.dot_dimension_numbers<[1], [0], [0], [1], [0, 0, 1, 1], [], []>} : vector<16x4xbf16>, vector<4x64xbf16>, vector<16x64xf32> -> vector<16x64xf32>
    %19 = vector.broadcast %1 : vector<1x64xf32> to vector<16x64xf32>
    %20 = arith.addf %18, %19 : vector<16x64xf32>
    %cst_33 = arith.constant dense<0.000000e+00> : vector<16xf32>
    %21 = vector.multi_reduction <add>, %20, %cst_33 [1] : vector<16x64xf32> to vector<16xf32>
    %22 = vector.shape_cast %21 : vector<16xf32> to vector<16x1xf32>
    %cst_34 = arith.constant 6.400000e+01 : f32
    %23 = vector.broadcast %cst_34 : f32 to vector<16x1xf32>
    %24 = arith.divf %22, %23 : vector<16x1xf32>
    %25 = vector.broadcast %24 : vector<16x1xf32> to vector<16x64xf32>
    %26 = arith.subf %20, %25 : vector<16x64xf32>
    %27 = arith.mulf %26, %26 : vector<16x64xf32>
    %cst_35 = arith.constant dense<0.000000e+00> : vector<16xf32>
    %28 = vector.multi_reduction <add>, %27, %cst_35 [1] : vector<16x64xf32> to vector<16xf32>
    %29 = vector.shape_cast %28 : vector<16xf32> to vector<16x1xf32>
    %cst_36 = arith.constant 6.400000e+01 : f32
    %30 = vector.broadcast %cst_36 : f32 to vector<16x1xf32>
    %31 = arith.divf %29, %30 : vector<16x1xf32>
    %32 = vector.broadcast %24 : vector<16x1xf32> to vector<16x64xf32>
    %33 = arith.subf %20, %32 : vector<16x64xf32>
    %cst_37 = arith.constant 9.99999974E-6 : f32
    %34 = vector.broadcast %cst_37 : f32 to vector<16x1xf32>
    %35 = arith.addf %31, %34 : vector<16x1xf32>
    %36 = math.rsqrt %35 : vector<16x1xf32>
    %37 = vector.broadcast %36 : vector<16x1xf32> to vector<16x64xf32>
    %38 = arith.mulf %33, %37 : vector<16x64xf32>
    %39 = vector.broadcast %2 : vector<1x64xf32> to vector<16x64xf32>
    %40 = arith.mulf %38, %39 : vector<16x64xf32>
    %41 = vector.broadcast %3 : vector<1x64xf32> to vector<16x64xf32>
    %42 = arith.addf %40, %41 : vector<16x64xf32>
    %cst_38 = arith.constant 0.000000e+00 : f32
    %43 = vector.broadcast %cst_38 : f32 to vector<16x64xf32>
    %44 = arith.maximumf %42, %43 : vector<16x64xf32>
    %45 = arith.truncf %44 : vector<16x64xf32> to vector<16x64xbf16>
    %cst_39 = arith.constant dense<0.000000e+00> : vector<16x64xf32>
    %46 = tpu.matmul %45, %4, %cst_39 {dimension_numbers = #tpu.dot_dimension_numbers<[1], [0], [0], [1], [0, 0, 1, 1], [], []>} : vector<16x64xbf16>, vector<64x64xbf16>, vector<16x64xf32> -> vector<16x64xf32>
    %47 = vector.broadcast %5 : vector<1x64xf32> to vector<16x64xf32>
    %48 = arith.addf %46, %47 : vector<16x64xf32>
    %cst_40 = arith.constant dense<0.000000e+00> : vector<16xf32>
    %49 = vector.multi_reduction <add>, %48, %cst_40 [1] : vector<16x64xf32> to vector<16xf32>
    %50 = vector.shape_cast %49 : vector<16xf32> to vector<16x1xf32>
    %cst_41 = arith.constant 6.400000e+01 : f32
    %51 = vector.broadcast %cst_41 : f32 to vector<16x1xf32>
    %52 = arith.divf %50, %51 : vector<16x1xf32>
    %53 = vector.broadcast %52 : vector<16x1xf32> to vector<16x64xf32>
    %54 = arith.subf %48, %53 : vector<16x64xf32>
    %55 = arith.mulf %54, %54 : vector<16x64xf32>
    %cst_42 = arith.constant dense<0.000000e+00> : vector<16xf32>
    %56 = vector.multi_reduction <add>, %55, %cst_42 [1] : vector<16x64xf32> to vector<16xf32>
    %57 = vector.shape_cast %56 : vector<16xf32> to vector<16x1xf32>
    %cst_43 = arith.constant 6.400000e+01 : f32
    %58 = vector.broadcast %cst_43 : f32 to vector<16x1xf32>
    %59 = arith.divf %57, %58 : vector<16x1xf32>
    %60 = vector.broadcast %52 : vector<16x1xf32> to vector<16x64xf32>
    %61 = arith.subf %48, %60 : vector<16x64xf32>
    %cst_44 = arith.constant 9.99999974E-6 : f32
    %62 = vector.broadcast %cst_44 : f32 to vector<16x1xf32>
    %63 = arith.addf %59, %62 : vector<16x1xf32>
    %64 = math.rsqrt %63 : vector<16x1xf32>
    %65 = vector.broadcast %64 : vector<16x1xf32> to vector<16x64xf32>
    %66 = arith.mulf %61, %65 : vector<16x64xf32>
    %67 = vector.broadcast %6 : vector<1x64xf32> to vector<16x64xf32>
    %68 = arith.mulf %66, %67 : vector<16x64xf32>
    %69 = vector.broadcast %7 : vector<1x64xf32> to vector<16x64xf32>
    %70 = arith.addf %68, %69 : vector<16x64xf32>
    %cst_45 = arith.constant 0.000000e+00 : f32
    %71 = vector.broadcast %cst_45 : f32 to vector<16x64xf32>
    %72 = arith.maximumf %70, %71 : vector<16x64xf32>
    %73 = arith.truncf %72 : vector<16x64xf32> to vector<16x64xbf16>
    %cst_46 = arith.constant dense<0.000000e+00> : vector<16x64xf32>
    %74 = tpu.matmul %73, %8, %cst_46 {dimension_numbers = #tpu.dot_dimension_numbers<[1], [0], [0], [1], [0, 0, 1, 1], [], []>} : vector<16x64xbf16>, vector<64x64xbf16>, vector<16x64xf32> -> vector<16x64xf32>
    %75 = vector.broadcast %9 : vector<1x64xf32> to vector<16x64xf32>
    %76 = arith.addf %74, %75 : vector<16x64xf32>
    %cst_47 = arith.constant dense<0.000000e+00> : vector<16xf32>
    %77 = vector.multi_reduction <add>, %76, %cst_47 [1] : vector<16x64xf32> to vector<16xf32>
    %78 = vector.shape_cast %77 : vector<16xf32> to vector<16x1xf32>
    %cst_48 = arith.constant 6.400000e+01 : f32
    %79 = vector.broadcast %cst_48 : f32 to vector<16x1xf32>
    %80 = arith.divf %78, %79 : vector<16x1xf32>
    %81 = vector.broadcast %80 : vector<16x1xf32> to vector<16x64xf32>
    %82 = arith.subf %76, %81 : vector<16x64xf32>
    %83 = arith.mulf %82, %82 : vector<16x64xf32>
    %cst_49 = arith.constant dense<0.000000e+00> : vector<16xf32>
    %84 = vector.multi_reduction <add>, %83, %cst_49 [1] : vector<16x64xf32> to vector<16xf32>
    %85 = vector.shape_cast %84 : vector<16xf32> to vector<16x1xf32>
    %cst_50 = arith.constant 6.400000e+01 : f32
    %86 = vector.broadcast %cst_50 : f32 to vector<16x1xf32>
    %87 = arith.divf %85, %86 : vector<16x1xf32>
    %88 = vector.broadcast %80 : vector<16x1xf32> to vector<16x64xf32>
    %89 = arith.subf %76, %88 : vector<16x64xf32>
    %cst_51 = arith.constant 9.99999974E-6 : f32
    %90 = vector.broadcast %cst_51 : f32 to vector<16x1xf32>
    %91 = arith.addf %87, %90 : vector<16x1xf32>
    %92 = math.rsqrt %91 : vector<16x1xf32>
    %93 = vector.broadcast %92 : vector<16x1xf32> to vector<16x64xf32>
    %94 = arith.mulf %89, %93 : vector<16x64xf32>
    %95 = vector.broadcast %10 : vector<1x64xf32> to vector<16x64xf32>
    %96 = arith.mulf %94, %95 : vector<16x64xf32>
    %97 = vector.broadcast %11 : vector<1x64xf32> to vector<16x64xf32>
    %98 = arith.addf %96, %97 : vector<16x64xf32>
    %cst_52 = arith.constant 0.000000e+00 : f32
    %99 = vector.broadcast %cst_52 : f32 to vector<16x64xf32>
    %100 = arith.maximumf %98, %99 : vector<16x64xf32>
    %101 = arith.truncf %100 : vector<16x64xf32> to vector<16x64xbf16>
    %cst_53 = arith.constant dense<0.000000e+00> : vector<16x32xf32>
    %102 = tpu.matmul %101, %12, %cst_53 {dimension_numbers = #tpu.dot_dimension_numbers<[1], [0], [0], [1], [0, 0, 1, 1], [], []>} : vector<16x64xbf16>, vector<64x32xbf16>, vector<16x32xf32> -> vector<16x32xf32>
    %103 = vector.broadcast %13 : vector<1x32xf32> to vector<16x32xf32>
    %104 = arith.addf %102, %103 : vector<16x32xf32>
    %cst_54 = arith.constant dense<0.000000e+00> : vector<16xf32>
    %105 = vector.multi_reduction <add>, %104, %cst_54 [1] : vector<16x32xf32> to vector<16xf32>
    %106 = vector.shape_cast %105 : vector<16xf32> to vector<16x1xf32>
    %cst_55 = arith.constant 3.200000e+01 : f32
    %107 = vector.broadcast %cst_55 : f32 to vector<16x1xf32>
    %108 = arith.divf %106, %107 : vector<16x1xf32>
    %109 = vector.broadcast %108 : vector<16x1xf32> to vector<16x32xf32>
    %110 = arith.subf %104, %109 : vector<16x32xf32>
    %111 = arith.mulf %110, %110 : vector<16x32xf32>
    %cst_56 = arith.constant dense<0.000000e+00> : vector<16xf32>
    %112 = vector.multi_reduction <add>, %111, %cst_56 [1] : vector<16x32xf32> to vector<16xf32>
    %113 = vector.shape_cast %112 : vector<16xf32> to vector<16x1xf32>
    %cst_57 = arith.constant 3.200000e+01 : f32
    %114 = vector.broadcast %cst_57 : f32 to vector<16x1xf32>
    %115 = arith.divf %113, %114 : vector<16x1xf32>
    %116 = vector.broadcast %108 : vector<16x1xf32> to vector<16x32xf32>
    %117 = arith.subf %104, %116 : vector<16x32xf32>
    %cst_58 = arith.constant 9.99999974E-6 : f32
    %118 = vector.broadcast %cst_58 : f32 to vector<16x1xf32>
    %119 = arith.addf %115, %118 : vector<16x1xf32>
    %120 = math.rsqrt %119 : vector<16x1xf32>
    %121 = vector.broadcast %120 : vector<16x1xf32> to vector<16x32xf32>
    %122 = arith.mulf %117, %121 : vector<16x32xf32>
    %123 = vector.broadcast %14 : vector<1x32xf32> to vector<16x32xf32>
    %124 = arith.mulf %122, %123 : vector<16x32xf32>
    %125 = vector.broadcast %15 : vector<1x32xf32> to vector<16x32xf32>
    %126 = arith.addf %124, %125 : vector<16x32xf32>
    %cst_59 = arith.constant 0.000000e+00 : f32
    %127 = vector.broadcast %cst_59 : f32 to vector<16x32xf32>
    %128 = arith.maximumf %126, %127 : vector<16x32xf32>
    %129 = arith.truncf %128 : vector<16x32xf32> to vector<16x32xbf16>
    %c0_60 = arith.constant 0 : index
    %c0_61 = arith.constant 0 : index
    %130 = vector.load %arg18[%c0_60, %c0_61] : memref<16x32xbf16, #tpu.memory_space<vmem>>, vector<16x32xbf16>
    tpu.vector_store %arg18[%c0_60, %c0_61], %129 {strides = array<i32>} : memref<16x32xbf16, #tpu.memory_space<vmem>>, vector<16x32xbf16>,
    return
  }
  func.func @transform_0(%arg0: i32) -> (i32, i32) {
    %c0_i32 = arith.constant 0 : i32
    %c0_i32_0 = arith.constant 0 : i32
    return %arg0, %c0_i32 : i32, i32
  }
  func.func @transform_1(%arg0: i32) -> (i32, i32) {
    %c0_i32 = arith.constant 0 : i32
    %c0_i32_0 = arith.constant 0 : i32
    %c0_i32_1 = arith.constant 0 : i32
    return %c0_i32, %c0_i32_0 : i32, i32
  }
  func.func @transform_2(%arg0: i32) -> (i32, i32) {
    %c0_i32 = arith.constant 0 : i32
    %c0_i32_0 = arith.constant 0 : i32
    %c0_i32_1 = arith.constant 0 : i32
    return %c0_i32, %c0_i32_0 : i32, i32
  }
  func.func @transform_3(%arg0: i32) -> (i32, i32) {
    %c0_i32 = arith.constant 0 : i32
    %c0_i32_0 = arith.constant 0 : i32
    %c0_i32_1 = arith.constant 0 : i32
    return %c0_i32, %c0_i32_0 : i32, i32
  }
  func.func @transform_4(%arg0: i32) -> (i32, i32) {
    %c0_i32 = arith.constant 0 : i32
    %c0_i32_0 = arith.constant 0 : i32
    %c0_i32_1 = arith.constant 0 : i32
    return %c0_i32, %c0_i32_0 : i32, i32
  }
  func.func @transform_5(%arg0: i32) -> (i32, i32) {
    %c0_i32 = arith.constant 0 : i32
    %c0_i32_0 = arith.constant 0 : i32
    %c0_i32_1 = arith.constant 0 : i32
    return %c0_i32, %c0_i32_0 : i32, i32
  }
  func.func @transform_6(%arg0: i32) -> (i32, i32) {
    %c0_i32 = arith.constant 0 : i32
    %c0_i32_0 = arith.constant 0 : i32
    %c0_i32_1 = arith.constant 0 : i32
    return %c0_i32, %c0_i32_0 : i32, i32
  }
  func.func @transform_7(%arg0: i32) -> (i32, i32) {
    %c0_i32 = arith.constant 0 : i32
    %c0_i32_0 = arith.constant 0 : i32
    %c0_i32_1 = arith.constant 0 : i32
    return %c0_i32, %c0_i32_0 : i32, i32
  }
  func.func @transform_8(%arg0: i32) -> (i32, i32) {
    %c0_i32 = arith.constant 0 : i32
    %c0_i32_0 = arith.constant 0 : i32
    %c0_i32_1 = arith.constant 0 : i32
    return %c0_i32, %c0_i32_0 : i32, i32
  }
  func.func @transform_9(%arg0: i32) -> (i32, i32) {
    %c0_i32 = arith.constant 0 : i32
    %c0_i32_0 = arith.constant 0 : i32
    %c0_i32_1 = arith.constant 0 : i32
    return %c0_i32, %c0_i32_0 : i32, i32
  }
  func.func @transform_10(%arg0: i32) -> (i32, i32) {
    %c0_i32 = arith.constant 0 : i32
    %c0_i32_0 = arith.constant 0 : i32
    %c0_i32_1 = arith.constant 0 : i32
    return %c0_i32, %c0_i32_0 : i32, i32
  }
  func.func @transform_11(%arg0: i32) -> (i32, i32) {
    %c0_i32 = arith.constant 0 : i32
    %c0_i32_0 = arith.constant 0 : i32
    %c0_i32_1 = arith.constant 0 : i32
    return %c0_i32, %c0_i32_0 : i32, i32
  }
  func.func @transform_12(%arg0: i32) -> (i32, i32) {
    %c0_i32 = arith.constant 0 : i32
    %c0_i32_0 = arith.constant 0 : i32
    %c0_i32_1 = arith.constant 0 : i32
    return %c0_i32, %c0_i32_0 : i32, i32
  }
  func.func @transform_13(%arg0: i32) -> (i32, i32) {
    %c0_i32 = arith.constant 0 : i32
    %c0_i32_0 = arith.constant 0 : i32
    %c0_i32_1 = arith.constant 0 : i32
    return %c0_i32, %c0_i32_0 : i32, i32
  }
  func.func @transform_14(%arg0: i32) -> (i32, i32) {
    %c0_i32 = arith.constant 0 : i32
    %c0_i32_0 = arith.constant 0 : i32
    %c0_i32_1 = arith.constant 0 : i32
    return %c0_i32, %c0_i32_0 : i32, i32
  }
  func.func @transform_15(%arg0: i32) -> (i32, i32) {
    %c0_i32 = arith.constant 0 : i32
    %c0_i32_0 = arith.constant 0 : i32
    %c0_i32_1 = arith.constant 0 : i32
    return %c0_i32, %c0_i32_0 : i32, i32
  }
  func.func @transform_16(%arg0: i32) -> (i32, i32) {
    %c0_i32 = arith.constant 0 : i32
    %c0_i32_0 = arith.constant 0 : i32
    %c0_i32_1 = arith.constant 0 : i32
    return %c0_i32, %c0_i32_0 : i32, i32
  }
  func.func @transform_17(%arg0: i32) -> (i32, i32) {
    %c0_i32 = arith.constant 0 : i32
    %c0_i32_0 = arith.constant 0 : i32
    return %arg0, %c0_i32 : i32, i32
  }
}

</mosaic_0001>

<llo_original>
// kernel: tpu_custom_call.1
$region0: #{tpu_custom_call.1}
  #allocation0 [shape = 'u32[]', space=smem, size = 0x4, offset = 0x4, fixed_abs, tag = 'smem constant byte address 0x4 - core index']
  #allocation1 [shape = 'u32[144,128]{1,0:T(1,128)}', space=vmem, size = 0x12000, scoped, tag = 'internal scratch']
  %s0 = inlined_call_operand.vmem [shape: f32[16,4], index: 0, kind: input, shape index: {}]
  %s1 = inlined_call_operand.hbm [shape: bf16[4,64], index: 1, kind: input, shape index: {}]
  %s2 = inlined_call_operand.hbm [shape: f32[1,64], index: 2, kind: input, shape index: {}]
  %s3 = inlined_call_operand.hbm [shape: f32[1,64], index: 3, kind: input, shape index: {}]
  %s4 = inlined_call_operand.hbm [shape: f32[1,64], index: 4, kind: input, shape index: {}]
  %s5 = inlined_call_operand.vmem [shape: bf16[64,64], index: 5, kind: input, shape index: {}]
  %s6 = inlined_call_operand.hbm [shape: f32[1,64], index: 6, kind: input, shape index: {}]
  %s7 = inlined_call_operand.hbm [shape: f32[1,64], index: 7, kind: input, shape index: {}]
  %s8 = inlined_call_operand.vmem [shape: f32[1,64], index: 8, kind: input, shape index: {}]
  %s9 = inlined_call_operand.vmem [shape: bf16[64,64], index: 9, kind: input, shape index: {}]
  %s10 = inlined_call_operand.vmem [shape: f32[1,64], index: 10, kind: input, shape index: {}]
  %s11 = inlined_call_operand.vmem [shape: f32[1,64], index: 11, kind: input, shape index: {}]
  %s12 = inlined_call_operand.vmem [shape: f32[1,64], index: 12, kind: input, shape index: {}]
  %s13 = inlined_call_operand.vmem [shape: bf16[64,32], index: 13, kind: input, shape index: {}]
  %s14 = inlined_call_operand.vmem [shape: f32[1,32], index: 14, kind: input, shape index: {}]
  %s15 = inlined_call_operand.vmem [shape: f32[1,32], index: 15, kind: input, shape index: {}]
  %s16 = inlined_call_operand.vmem [shape: f32[1,32], index: 16, kind: input, shape index: {}]
  %s17 = inlined_call_operand.hbm [shape: bf16[16,32], index: 17, kind: output, shape index: {}]
  %s18 = sld [smem:[#allocation0]]
  $region102: #{tpu_custom_call.1} parent=0
    _
  %s20 = ssub.s32 1, %s18
  %s21 = scalar_select 0, %s20, %s18
  $region1: #{tpu_custom_call.1} parent=0
    #allocation2 [shape = 'u8[1024]{0}', space=vmem, size = 0x400, scoped, tag = 'input window, operand 1, single buffered']
    #allocation3 [shape = 's32[1]{0}', space=sflag, size = 0x4, scoped, tag = 'scoped memory for tpu_custom_call.1']
    #allocation4 [shape = 's32[1]{0}', space=sflag, size = 0x4, scoped, tag = 'scoped memory for tpu_custom_call.1']
    #allocation5 [shape = 'u8[512]{0}', space=vmem, size = 0x400, scoped, tag = 'input window, operand 2, single buffered']
    #allocation6 [shape = 's32[1]{0}', space=sflag, size = 0x4, scoped, tag = 'scoped memory for tpu_custom_call.1']
    #allocation7 [shape = 'u8[512]{0}', space=vmem, size = 0x400, scoped, tag = 'input window, operand 3, single buffered']
    #allocation8 [shape = 'u8[512]{0}', space=vmem, size = 0x400, scoped, tag = 'input window, operand 4, single buffered']
    #allocation9 [shape = 's32[1]{0}', space=sflag, size = 0x4, scoped, tag = 'scoped memory for tpu_custom_call.1']
    #allocation10 [shape = 'u8[512]{0}', space=vmem, size = 0x400, scoped, tag = 'input window, operand 6, single buffered']
    #allocation11 [shape = 'u8[512]{0}', space=vmem, size = 0x400, scoped, tag = 'input window, operand 7, single buffered']
    #allocation12 [shape = 's32[1]{0}', space=sflag, size = 0x4, scoped, tag = 'scoped memory for tpu_custom_call.1']
    #allocation13 [shape = 'u8[4096]{0}', space=vmem, size = 0x1000, scoped, tag = 'output window, operand 0, single buffered']
    %22 = vsyncpa [#allocation3], 0
    %23 = vsyncpa [#allocation6], 0
    %24 = vsyncpa [#allocation9], 0
    %25 = vsyncpa [#allocation12], 0
    %26 = vsyncpa [#allocation4], 0
    // Predicated region
    $region2: #{tpu_custom_call.1} parent=1 // pred_check
      _
    $region3: #{tpu_custom_call.1} parent=1 // pred_check_branch
      %28 = sbr.rel (0) target = $region5
    $region4: #{tpu_custom_call.1} parent=1 // pred_region
      _
    $region5: #{tpu_custom_call.1} parent=1 // pred_fallthru
      _
    // Predicated region
    $region6: #{tpu_custom_call.1} parent=1 // pred_check
      _
    $region7: #{tpu_custom_call.1} parent=1 // pred_check_branch
      %30 = sbr.rel (0) target = $region9
    $region8: #{tpu_custom_call.1} parent=1 // pred_region
      %s32 = ssub.s32 32, 32
      %33 = vsyncadd [#allocation3], %s32
      %s35 = sshll.u32 [#allocation2], 4
      %s36 = int_to_ptr.vmem [resolvable:$true] %s35
      %38 = dma.hbm_to_vmem [thread:$0]  %s1, 32, %s36, [#allocation3]
    $region9: #{tpu_custom_call.1} parent=1 // pred_fallthru
      _
    // Predicated region
    $region10: #{tpu_custom_call.1} parent=1 // pred_check
      _
    $region11: #{tpu_custom_call.1} parent=1 // pred_check_branch
      %40 = sbr.rel (0) target = $region13
    $region12: #{tpu_custom_call.1} parent=1 // pred_region
      %s42 = ssub.s32 16, 16
      %43 = vsyncadd [#allocation6], %s42
      %s45 = sshll.u32 [#allocation5], 4
      %s46 = int_to_ptr.vmem [resolvable:$true] %s45
      %48 = dma.hbm_to_vmem [thread:$0]  %s2, 16, %s46, [#allocation6]
    $region13: #{tpu_custom_call.1} parent=1 // pred_fallthru
      _
    // Predicated region
    $region14: #{tpu_custom_call.1} parent=1 // pred_check
      _
    $region15: #{tpu_custom_call.1} parent=1 // pred_check_branch
      %50 = sbr.rel (0) target = $region17
    $region16: #{tpu_custom_call.1} parent=1 // pred_region
      %s52 = ssub.s32 16, 16
      %53 = vsyncadd [#allocation6], %s52
      %s55 = sshll.u32 [#allocation7], 4
      %s56 = int_to_ptr.vmem [resolvable:$true] %s55
      %58 = dma.hbm_to_vmem [thread:$0]  %s3, 16, %s56, [#allocation6]
    $region17: #{tpu_custom_call.1} parent=1 // pred_fallthru
      _
    // Predicated region
    $region18: #{tpu_custom_call.1} parent=1 // pred_check
      _
    $region19: #{tpu_custom_call.1} parent=1 // pred_check_branch
      %60 = sbr.rel (0) target = $region21
    $region20: #{tpu_custom_call.1} parent=1 // pred_region
      %s62 = ssub.s32 16, 16
      %63 = vsyncadd [#allocation9], %s62
      %s65 = sshll.u32 [#allocation8], 4
      %s66 = int_to_ptr.vmem [resolvable:$true] %s65
      %68 = dma.hbm_to_vmem [thread:$0]  %s4, 16, %s66, [#allocation9]
    $region21: #{tpu_custom_call.1} parent=1 // pred_fallthru
      _
    // Predicated region
    $region22: #{tpu_custom_call.1} parent=1 // pred_check
      _
    $region23: #{tpu_custom_call.1} parent=1 // pred_check_branch
      %70 = sbr.rel (0) target = $region25
    $region24: #{tpu_custom_call.1} parent=1 // pred_region
      _
    $region25: #{tpu_custom_call.1} parent=1 // pred_fallthru
      _
    // Predicated region
    $region26: #{tpu_custom_call.1} parent=1 // pred_check
      _
    $region27: #{tpu_custom_call.1} parent=1 // pred_check_branch
      %72 = sbr.rel (0) target = $region29
    $region28: #{tpu_custom_call.1} parent=1 // pred_region
      %s74 = ssub.s32 16, 16
      %75 = vsyncadd [#allocation9], %s74
      %s77 = sshll.u32 [#allocation10], 4
      %s78 = int_to_ptr.vmem [resolvable:$true] %s77
      %80 = dma.hbm_to_vmem [thread:$0]  %s6, 16, %s78, [#allocation9]
    $region29: #{tpu_custom_call.1} parent=1 // pred_fallthru
      _
    // Predicated region
    $region30: #{tpu_custom_call.1} parent=1 // pred_check
      _
    $region31: #{tpu_custom_call.1} parent=1 // pred_check_branch
      %82 = sbr.rel (0) target = $region33
    $region32: #{tpu_custom_call.1} parent=1 // pred_region
      %s84 = ssub.s32 16, 16
      %85 = vsyncadd [#allocation12], %s84
      %s87 = sshll.u32 [#allocation11], 4
      %s88 = int_to_ptr.vmem [resolvable:$true] %s87
      %90 = dma.hbm_to_vmem [thread:$0]  %s7, 16, %s88, [#allocation12]
    $region33: #{tpu_custom_call.1} parent=1 // pred_fallthru
      _
    // Predicated region
    $region34: #{tpu_custom_call.1} parent=1 // pred_check
      _
    $region35: #{tpu_custom_call.1} parent=1 // pred_check_branch
      %92 = sbr.rel (0) target = $region37
    $region36: #{tpu_custom_call.1} parent=1 // pred_region
      _
    $region37: #{tpu_custom_call.1} parent=1 // pred_fallthru
      _
    // Predicated region
    $region38: #{tpu_custom_call.1} parent=1 // pred_check
      _
    $region39: #{tpu_custom_call.1} parent=1 // pred_check_branch
      %94 = sbr.rel (0) target = $region41
    $region40: #{tpu_custom_call.1} parent=1 // pred_region
      _
    $region41: #{tpu_custom_call.1} parent=1 // pred_fallthru
      _
    // Predicated region
    $region42: #{tpu_custom_call.1} parent=1 // pred_check
      _
    $region43: #{tpu_custom_call.1} parent=1 // pred_check_branch
      %96 = sbr.rel (0) target = $region45
    $region44: #{tpu_custom_call.1} parent=1 // pred_region
      _
    $region45: #{tpu_custom_call.1} parent=1 // pred_fallthru
      _
    // Predicated region
    $region46: #{tpu_custom_call.1} parent=1 // pred_check
      _
    $region47: #{tpu_custom_call.1} parent=1 // pred_check_branch
      %98 = sbr.rel (0) target = $region49
    $region48: #{tpu_custom_call.1} parent=1 // pred_region
      _
    $region49: #{tpu_custom_call.1} parent=1 // pred_fallthru
      _
    // Predicated region
    $region50: #{tpu_custom_call.1} parent=1 // pred_check
      _
    $region51: #{tpu_custom_call.1} parent=1 // pred_check_branch
      %100 = sbr.rel (0) target = $region53
    $region52: #{tpu_custom_call.1} parent=1 // pred_region
      _
    $region53: #{tpu_custom_call.1} parent=1 // pred_fallthru
      _
    // Predicated region
    $region54: #{tpu_custom_call.1} parent=1 // pred_check
      _
    $region55: #{tpu_custom_call.1} parent=1 // pred_check_branch
      %102 = sbr.rel (0) target = $region57
    $region56: #{tpu_custom_call.1} parent=1 // pred_region
      _
    $region57: #{tpu_custom_call.1} parent=1 // pred_fallthru
      _
    // Predicated region
    $region58: #{tpu_custom_call.1} parent=1 // pred_check
      _
    $region59: #{tpu_custom_call.1} parent=1 // pred_check_branch
      %104 = sbr.rel (0) target = $region61
    $region60: #{tpu_custom_call.1} parent=1 // pred_region
      _
    $region61: #{tpu_custom_call.1} parent=1 // pred_fallthru
      _
    // Predicated region
    $region62: #{tpu_custom_call.1} parent=1 // pred_check
      _
    $region63: #{tpu_custom_call.1} parent=1 // pred_check_branch
      %106 = sbr.rel (0) target = $region65
    $region64: #{tpu_custom_call.1} parent=1 // pred_region
      _
    $region65: #{tpu_custom_call.1} parent=1 // pred_fallthru
      _
    // Predicated region
    $region66: #{tpu_custom_call.1} parent=1 // pred_check
      _
    $region67: #{tpu_custom_call.1} parent=1 // pred_check_branch
      %108 = sbr.rel (0) target = $region69
    $region68: #{tpu_custom_call.1} parent=1 // pred_region
      _
    $region69: #{tpu_custom_call.1} parent=1 // pred_fallthru
      _
    // Predicated region
    $region70: #{tpu_custom_call.1} parent=1 // pred_check
      _
    $region71: #{tpu_custom_call.1} parent=1 // pred_check_branch
      %110 = sbr.rel (0) target = $region73
    $region72: #{tpu_custom_call.1} parent=1 // pred_region
      %111 = dma.done [#allocation3], 32
    $region73: #{tpu_custom_call.1} parent=1 // pred_fallthru
      _
    // Predicated region
    $region74: #{tpu_custom_call.1} parent=1 // pred_check
      _
    $region75: #{tpu_custom_call.1} parent=1 // pred_check_branch
      %113 = sbr.rel (0) target = $region77
    $region76: #{tpu_custom_call.1} parent=1 // pred_region
      %114 = dma.done [#allocation6], 16
    $region77: #{tpu_custom_call.1} parent=1 // pred_fallthru
      _
    // Predicated region
    $region78: #{tpu_custom_call.1} parent=1 // pred_check
      _
    $region79: #{tpu_custom_call.1} parent=1 // pred_check_branch
      %116 = sbr.rel (0) target = $region81
    $region80: #{tpu_custom_call.1} parent=1 // pred_region
      %117 = dma.done [#allocation6], 16
    $region81: #{tpu_custom_call.1} parent=1 // pred_fallthru
      _
    // Predicated region
    $region82: #{tpu_custom_call.1} parent=1 // pred_check
      _
    $region83: #{tpu_custom_call.1} parent=1 // pred_check_branch
      %119 = sbr.rel (0) target = $region85
    $region84: #{tpu_custom_call.1} parent=1 // pred_region
      %120 = dma.done [#allocation9], 16
    $region85: #{tpu_custom_call.1} parent=1 // pred_fallthru
      _
    // Predicated region
    $region86: #{tpu_custom_call.1} parent=1 // pred_check
      _
    $region87: #{tpu_custom_call.1} parent=1 // pred_check_branch
      %122 = sbr.rel (0) target = $region89
    $region88: #{tpu_custom_call.1} parent=1 // pred_region
      %123 = dma.done [#allocation9], 16
    $region89: #{tpu_custom_call.1} parent=1 // pred_fallthru
      _
    // Predicated region
    $region90: #{tpu_custom_call.1} parent=1 // pred_check
      _
    $region91: #{tpu_custom_call.1} parent=1 // pred_check_branch
      %125 = sbr.rel (0) target = $region93
    $region92: #{tpu_custom_call.1} parent=1 // pred_region
      %126 = dma.done [#allocation12], 16
    $region93: #{tpu_custom_call.1} parent=1 // pred_fallthru
      _
    %v128 = vld [vmem:[#allocation2] sm:$0x3]
    %v129 = vld [vmem:[#allocation5] sm:$0x1]
    %v130 = vld [vmem:[#allocation7] sm:$0x1]
    %v131 = vld [vmem:[#allocation8] sm:$0x1]
    %v132 = vld [vmem:[%s5] sm:$0xf]
    %v133 = vld [vmem:[%s5 + $0x4] sm:$0xf]
    %v134 = vld [vmem:[%s5 + $0x8] sm:$0xf]
    %v135 = vld [vmem:[%s5 + $0xc] sm:$0xf]
    %v136 = vld [vmem:[%s5 + $0x10] sm:$0xf]
    %v137 = vld [vmem:[%s5 + $0x14] sm:$0xf]
    %v138 = vld [vmem:[%s5 + $0x18] sm:$0xf]
    %v139 = vld [vmem:[%s5 + $0x1c] sm:$0xf]
    %v140 = vld [vmem:[#allocation10] sm:$0x1]
    %v141 = vld [vmem:[#allocation11] sm:$0x1]
    %v142 = vld [vmem:[%s8] sm:$0x1]
    %v143 = vld [vmem:[%s9] sm:$0xf]
    %v144 = vld [vmem:[%s9 + $0x4] sm:$0xf]
    %v145 = vld [vmem:[%s9 + $0x8] sm:$0xf]
    %v146 = vld [vmem:[%s9 + $0xc] sm:$0xf]
    %v147 = vld [vmem:[%s9 + $0x10] sm:$0xf]
    %v148 = vld [vmem:[%s9 + $0x14] sm:$0xf]
    %v149 = vld [vmem:[%s9 + $0x18] sm:$0xf]
    %v150 = vld [vmem:[%s9 + $0x1c] sm:$0xf]
    %v151 = vld [vmem:[%s10] sm:$0x1]
    %v152 = vld [vmem:[%s11] sm:$0x1]
    %v153 = vld [vmem:[%s12] sm:$0x1]
    %v154 = vld [vmem:[%s13] sm:$0xf]
    %v155 = vld [vmem:[%s13 + $0x4] sm:$0xf]
    %v156 = vld [vmem:[%s13 + $0x8] sm:$0xf]
    %v157 = vld [vmem:[%s13 + $0xc] sm:$0xf]
    %v158 = vld [vmem:[%s13 + $0x10] sm:$0xf]
    %v159 = vld [vmem:[%s13 + $0x14] sm:$0xf]
    %v160 = vld [vmem:[%s13 + $0x18] sm:$0xf]
    %v161 = vld [vmem:[%s13 + $0x1c] sm:$0xf]
    %v162 = vld [vmem:[%s14] sm:$0x1]
    %v163 = vld [vmem:[%s15] sm:$0x1]
    %v164 = vld [vmem:[%s16] sm:$0x1]
    %v165 = vld [vmem:[%s0] sm:$0xff]
    %v166 = vld [vmem:[%s0 + $0x8] sm:$0xff]
    %v167 = vpack.c.bf16 %v166, %v165
    %v169 = vlaneseq
    %v170 = vshrl.u32 %v169, 7
    %v171 = vsub.s32 0, %v170
    %v172 = vrot.slane %v129, %v171
    %vm174 = vcmask 31744
    %v176 = vsel %vm174, %v167, 0
    %vm178 = vcmask 1041408
    %v180 = vsel %vm178, %v128, 0
    %182 = vmatprep.subr.bf16.mxu0 0
    %183 = vmatpush1.bf16.msra.mxu0 0
    %184 = vmatprep.subr.bf16.mxu0 0
    %185 = vmatpush1.bf16.msra.mxu0 0
    %186 = vmatprep.subr.bf16.mxu0 0
    %187 = vmatpush1.bf16.msra.mxu0 0
    %188 = vmatprep.subr.bf16.mxu0 0
    %189 = vmatpush1.bf16.msra.mxu0 0
    %190 = vmatprep.subr.bf16.mxu0 0
    %191 = vmatpush1.bf16.msra.mxu0 0
    %192 = vmatprep.subr.bf16.mxu0 0
    %193 = vmatpush1.bf16.msra.mxu0 0
    %194 = vmatprep.subr.bf16.mxu0 0
    %195 = vmatpush1.bf16.msra.mxu0 0
    %196 = vmatprep.subr.bf16.mxu0 0
    %197 = vmatpush1.bf16.msra.mxu0 %v180
    %198 = vmatprep.subr.bf16.mxu0 0
    %199 = vmatpush2.bf16.msra.mxu0 0
    %200 = vmatprep.subr.bf16.mxu0 0
    %201 = vmatpush2.bf16.msra.mxu0 0
    %202 = vmatprep.subr.bf16.mxu0 0
    %203 = vmatpush2.bf16.msra.mxu0 0
    %204 = vmatprep.subr.bf16.mxu0 0
    %205 = vmatpush2.bf16.msra.mxu0 0
    %206 = vmatprep.subr.bf16.mxu0 0
    %207 = vmatpush2.bf16.msra.mxu0 0
    %208 = vmatprep.subr.bf16.mxu0 0
    %209 = vmatpush2.bf16.msra.mxu0 0
    %210 = vmatprep.subr.bf16.mxu0 0
    %211 = vmatpush2.bf16.msra.mxu0 0
    %212 = vmatprep.subr.bf16.mxu0 0
    %213 = vmatpush2.bf16.msra.mxu0 0
    %214 = vmatprep.mubr.bf16.mxu0 0
    %215 = vmatmul.mubr.bf16.gmra.mxu0 %v176
    %v216 = vpop.f32.mrf.mxu0
    %v217 = vadd.f32 %v172, %v216
    %v218 = vpop.f32.mrf.mxu0
    %v219 = vpop.f32.mrf.mxu0
    %v220 = vadd.f32 %v172, %v219
    %v221 = vpop.f32.mrf.mxu0
    %222 = vdwg.mxu0
    %vm223 = vcmask 523264
    %v224 = vsel %vm223, %v217, 0.0
    %225 = vadd.xlane.f32.xlu0 %v224
    %v226 = vpop.xlane.xlu0 %225
    %v227 = vsel %vm223, %v220, 0.0
    %228 = vadd.xlane.f32.xlu0 %v227
    %v229 = vpop.xlane.xlu0 %228
    %v230 = vrcp.pop 64.0
    %v231 = vmul.f32 %v226, %v230
    %v232 = vmul.f32 %v229, %v230
    %v233 = vsub.f32 %v217, %v231
    %v234 = vsub.f32 %v220, %v232
    %v235 = vmul.f32 %v233, %v233
    %v236 = vmul.f32 %v234, %v234
    %v237 = vsel %vm223, %v235, 0.0
    %238 = vadd.xlane.f32.xlu0 %v237
    %v239 = vpop.xlane.xlu0 %238
    %v240 = vsel %vm223, %v236, 0.0
    %241 = vadd.xlane.f32.xlu0 %v240
    %v242 = vpop.xlane.xlu0 %241
    %v243 = vmul.f32 %v239, %v230
    %v244 = vmul.f32 %v242, %v230
    %v245 = vadd.f32 %v243, 1e-05
    %v246 = vadd.f32 %v244, 1e-05
    %v247 = vrsqrt.pop %v245
    %v248 = vrsqrt.pop %v246
    %v249 = vmul.f32 %v233, %v247
    %v250 = vmul.f32 %v234, %v248
    %v252 = vlaneseq
    %v253 = vshrl.u32 %v252, 7
    %v254 = vsub.s32 0, %v253
    %v255 = vrot.slane %v130, %v254
    %v257 = vmul.f32 %v249, %v255
    %v258 = vmul.f32 %v250, %v255
    %v260 = vlaneseq
    %v261 = vshrl.u32 %v260, 7
    %v262 = vsub.s32 0, %v261
    %v263 = vrot.slane %v131, %v262
    %v265 = vadd.f32 %v257, %v263
    %v266 = vadd.f32 %v258, %v263
    %v267 = vmax.f32 %v265, 0.0
    %v268 = vmax.f32 %v266, 0.0
    %v269 = vpack.c.bf16 %v268, %v267
    %v271 = vlaneseq
    %v272 = vshrl.u32 %v271, 7
    %v273 = vsub.s32 0, %v272
    %v274 = vrot.slane %v140, %v273
    %v284 = vunpack.c.l.b16 %v132
    %v285 = vunpack.c.l.b16 %v133
    %v286 = vunpack.c.l.b16 %v134
    %v287 = vunpack.c.l.b16 %v135
    %v288 = vunpack.c.l.b16 %v136
    %v289 = vunpack.c.l.b16 %v137
    %v290 = vunpack.c.l.b16 %v138
    %v291 = vunpack.c.l.b16 %v139
    %v292 = vpack.c.b16 %v285, %v284
    %v293 = vpack.c.b16 %v287, %v286
    %v294 = vpack.c.b16 %v289, %v288
    %v295 = vpack.c.b16 %v291, %v290
    %v301 = vsel %vm223, %v269, 0
    %303 = vmatprep.subr.bf16.mxu0 0
    %304 = vmatpush1.bf16.msra.mxu0 0
    %305 = vmatprep.subr.bf16.mxu0 0
    %306 = vmatpush1.bf16.msra.mxu0 0
    %307 = vmatprep.subr.bf16.mxu0 0
    %308 = vmatpush1.bf16.msra.mxu0 0
    %309 = vmatprep.subr.bf16.mxu0 0
    %310 = vmatpush1.bf16.msra.mxu0 0
    %311 = vmatprep.subr.bf16.mxu0 0
    %312 = vmatpush1.bf16.msra.mxu0 %v295
    %313 = vmatprep.subr.bf16.mxu0 0
    %314 = vmatpush1.bf16.msra.mxu0 %v294
    %315 = vmatprep.subr.bf16.mxu0 0
    %316 = vmatpush1.bf16.msra.mxu0 %v293
    %317 = vmatprep.subr.bf16.mxu0 0
    %318 = vmatpush1.bf16.msra.mxu0 %v292
    %319 = vmatprep.subr.bf16.mxu0 0
    %320 = vmatpush2.bf16.msra.mxu0 0
    %321 = vmatprep.subr.bf16.mxu0 0
    %322 = vmatpush2.bf16.msra.mxu0 0
    %323 = vmatprep.subr.bf16.mxu0 0
    %324 = vmatpush2.bf16.msra.mxu0 0
    %325 = vmatprep.subr.bf16.mxu0 0
    %326 = vmatpush2.bf16.msra.mxu0 0
    %327 = vmatprep.subr.bf16.mxu0 0
    %328 = vmatpush2.bf16.msra.mxu0 0
    %329 = vmatprep.subr.bf16.mxu0 0
    %330 = vmatpush2.bf16.msra.mxu0 0
    %331 = vmatprep.subr.bf16.mxu0 0
    %332 = vmatpush2.bf16.msra.mxu0 0
    %333 = vmatprep.subr.bf16.mxu0 0
    %334 = vmatpush2.bf16.msra.mxu0 0
    %335 = vmatprep.mubr.bf16.mxu0 0
    %336 = vmatmul.mubr.bf16.gmra.mxu0 %v301
    %v337 = vpop.f32.mrf.mxu0
    %v338 = vadd.f32 %v274, %v337
    %v339 = vpop.f32.mrf.mxu0
    %v340 = vpop.f32.mrf.mxu0
    %v341 = vadd.f32 %v274, %v340
    %v342 = vpop.f32.mrf.mxu0
    %343 = vdwg.mxu0
    %v344 = vsel %vm223, %v338, 0.0
    %345 = vadd.xlane.f32.xlu0 %v344
    %v346 = vpop.xlane.xlu0 %345
    %v347 = vsel %vm223, %v341, 0.0
    %348 = vadd.xlane.f32.xlu0 %v347
    %v349 = vpop.xlane.xlu0 %348
    %v350 = vmul.f32 %v346, %v230
    %v351 = vmul.f32 %v349, %v230
    %v352 = vsub.f32 %v338, %v350
    %v353 = vsub.f32 %v341, %v351
    %v354 = vmul.f32 %v352, %v352
    %v355 = vmul.f32 %v353, %v353
    %v356 = vsel %vm223, %v354, 0.0
    %357 = vadd.xlane.f32.xlu0 %v356
    %v358 = vpop.xlane.xlu0 %357
    %v359 = vsel %vm223, %v355, 0.0
    %360 = vadd.xlane.f32.xlu0 %v359
    %v361 = vpop.xlane.xlu0 %360
    %v362 = vmul.f32 %v358, %v230
    %v363 = vmul.f32 %v361, %v230
    %v364 = vadd.f32 %v362, 1e-05
    %v365 = vadd.f32 %v363, 1e-05
    %v366 = vrsqrt.pop %v364
    %v367 = vrsqrt.pop %v365
    %v368 = vmul.f32 %v352, %v366
    %v369 = vmul.f32 %v353, %v367
    %v371 = vlaneseq
    %v372 = vshrl.u32 %v371, 7
    %v373 = vsub.s32 0, %v372
    %v374 = vrot.slane %v141, %v373
    %v376 = vmul.f32 %v368, %v374
    %v377 = vmul.f32 %v369, %v374
    %v379 = vlaneseq
    %v380 = vshrl.u32 %v379, 7
    %v381 = vsub.s32 0, %v380
    %v382 = vrot.slane %v142, %v381
    %v384 = vadd.f32 %v376, %v382
    %v385 = vadd.f32 %v377, %v382
    %v386 = vmax.f32 %v384, 0.0
    %v387 = vmax.f32 %v385, 0.0
    %v388 = vpack.c.bf16 %v387, %v386
    %v390 = vlaneseq
    %v391 = vshrl.u32 %v390, 7
    %v392 = vsub.s32 0, %v391
    %v393 = vrot.slane %v151, %v392
    %v403 = vunpack.c.l.b16 %v143
    %v404 = vunpack.c.l.b16 %v144
    %v405 = vunpack.c.l.b16 %v145
    %v406 = vunpack.c.l.b16 %v146
    %v407 = vunpack.c.l.b16 %v147
    %v408 = vunpack.c.l.b16 %v148
    %v409 = vunpack.c.l.b16 %v149
    %v410 = vunpack.c.l.b16 %v150
    %v411 = vpack.c.b16 %v404, %v403
    %v412 = vpack.c.b16 %v406, %v405
    %v413 = vpack.c.b16 %v408, %v407
    %v414 = vpack.c.b16 %v410, %v409
    %v420 = vsel %vm223, %v388, 0
    %422 = vmatprep.subr.bf16.mxu0 0
    %423 = vmatpush1.bf16.msra.mxu0 0
    %424 = vmatprep.subr.bf16.mxu0 0
    %425 = vmatpush1.bf16.msra.mxu0 0
    %426 = vmatprep.subr.bf16.mxu0 0
    %427 = vmatpush1.bf16.msra.mxu0 0
    %428 = vmatprep.subr.bf16.mxu0 0
    %429 = vmatpush1.bf16.msra.mxu0 0
    %430 = vmatprep.subr.bf16.mxu0 0
    %431 = vmatpush1.bf16.msra.mxu0 %v414
    %432 = vmatprep.subr.bf16.mxu0 0
    %433 = vmatpush1.bf16.msra.mxu0 %v413
    %434 = vmatprep.subr.bf16.mxu0 0
    %435 = vmatpush1.bf16.msra.mxu0 %v412
    %436 = vmatprep.subr.bf16.mxu0 0
    %437 = vmatpush1.bf16.msra.mxu0 %v411
    %438 = vmatprep.subr.bf16.mxu0 0
    %439 = vmatpush2.bf16.msra.mxu0 0
    %440 = vmatprep.subr.bf16.mxu0 0
    %441 = vmatpush2.bf16.msra.mxu0 0
    %442 = vmatprep.subr.bf16.mxu0 0
    %443 = vmatpush2.bf16.msra.mxu0 0
    %444 = vmatprep.subr.bf16.mxu0 0
    %445 = vmatpush2.bf16.msra.mxu0 0
    %446 = vmatprep.subr.bf16.mxu0 0
    %447 = vmatpush2.bf16.msra.mxu0 0
    %448 = vmatprep.subr.bf16.mxu0 0
    %449 = vmatpush2.bf16.msra.mxu0 0
    %450 = vmatprep.subr.bf16.mxu0 0
    %451 = vmatpush2.bf16.msra.mxu0 0
    %452 = vmatprep.subr.bf16.mxu0 0
    %453 = vmatpush2.bf16.msra.mxu0 0
    %454 = vmatprep.mubr.bf16.mxu0 0
    %455 = vmatmul.mubr.bf16.gmra.mxu0 %v420
    %v456 = vpop.f32.mrf.mxu0
    %v457 = vadd.f32 %v393, %v456
    %v458 = vpop.f32.mrf.mxu0
    %v459 = vpop.f32.mrf.mxu0
    %v460 = vadd.f32 %v393, %v459
    %v461 = vpop.f32.mrf.mxu0
    %462 = vdwg.mxu0
    %v463 = vsel %vm223, %v457, 0.0
    %464 = vadd.xlane.f32.xlu0 %v463
    %v465 = vpop.xlane.xlu0 %464
    %v466 = vsel %vm223, %v460, 0.0
    %467 = vadd.xlane.f32.xlu0 %v466
    %v468 = vpop.xlane.xlu0 %467
    %v469 = vmul.f32 %v465, %v230
    %v470 = vmul.f32 %v468, %v230
    %v471 = vsub.f32 %v457, %v469
    %v472 = vsub.f32 %v460, %v470
    %v473 = vmul.f32 %v471, %v471
    %v474 = vmul.f32 %v472, %v472
    %v475 = vsel %vm223, %v473, 0.0
    %476 = vadd.xlane.f32.xlu0 %v475
    %v477 = vpop.xlane.xlu0 %476
    %v478 = vsel %vm223, %v474, 0.0
    %479 = vadd.xlane.f32.xlu0 %v478
    %v480 = vpop.xlane.xlu0 %479
    %v481 = vmul.f32 %v477, %v230
    %v482 = vmul.f32 %v480, %v230
    %v483 = vadd.f32 %v481, 1e-05
    %v484 = vadd.f32 %v482, 1e-05
    %v485 = vrsqrt.pop %v483
    %v486 = vrsqrt.pop %v484
    %v487 = vmul.f32 %v471, %v485
    %v488 = vmul.f32 %v472, %v486
    %v490 = vlaneseq
    %v491 = vshrl.u32 %v490, 7
    %v492 = vsub.s32 0, %v491
    %v493 = vrot.slane %v152, %v492
    %v495 = vmul.f32 %v487, %v493
    %v496 = vmul.f32 %v488, %v493
    %v498 = vlaneseq
    %v499 = vshrl.u32 %v498, 7
    %v500 = vsub.s32 0, %v499
    %v501 = vrot.slane %v153, %v500
    %v503 = vadd.f32 %v495, %v501
    %v504 = vadd.f32 %v496, %v501
    %v505 = vmax.f32 %v503, 0.0
    %v506 = vmax.f32 %v504, 0.0
    %v507 = vpack.c.bf16 %v506, %v505
    %v509 = vlaneseq
    %v510 = vshrl.u32 %v509, 7
    %v511 = vsub.s32 0, %v510
    %v512 = vrot.slane %v162, %v511
    %v522 = vunpack.c.l.b16 %v154
    %v523 = vunpack.c.l.b16 %v155
    %v524 = vunpack.c.l.b16 %v156
    %v525 = vunpack.c.l.b16 %v157
    %v526 = vunpack.c.l.b16 %v158
    %v527 = vunpack.c.l.b16 %v159
    %v528 = vunpack.c.l.b16 %v160
    %v529 = vunpack.c.l.b16 %v161
    %v530 = vpack.c.b16 %v523, %v522
    %v531 = vpack.c.b16 %v525, %v524
    %v532 = vpack.c.b16 %v527, %v526
    %v533 = vpack.c.b16 %v529, %v528
    %v539 = vsel %vm223, %v507, 0
    %541 = vmatprep.subr.bf16.mxu0 0
    %542 = vmatpush1.bf16.msra.mxu0 0
    %543 = vmatprep.subr.bf16.mxu0 0
    %544 = vmatpush1.bf16.msra.mxu0 0
    %545 = vmatprep.subr.bf16.mxu0 0
    %546 = vmatpush1.bf16.msra.mxu0 0
    %547 = vmatprep.subr.bf16.mxu0 0
    %548 = vmatpush1.bf16.msra.mxu0 0
    %549 = vmatprep.subr.bf16.mxu0 0
    %550 = vmatpush1.bf16.msra.mxu0 %v533
    %551 = vmatprep.subr.bf16.mxu0 0
    %552 = vmatpush1.bf16.msra.mxu0 %v532
    %553 = vmatprep.subr.bf16.mxu0 0
    %554 = vmatpush1.bf16.msra.mxu0 %v531
    %555 = vmatprep.subr.bf16.mxu0 0
    %556 = vmatpush1.bf16.msra.mxu0 %v530
    %557 = vmatprep.subr.bf16.mxu0 0
    %558 = vmatpush2.bf16.msra.mxu0 0
    %559 = vmatprep.subr.bf16.mxu0 0
    %560 = vmatpush2.bf16.msra.mxu0 0
    %561 = vmatprep.subr.bf16.mxu0 0
    %562 = vmatpush2.bf16.msra.mxu0 0
    %563 = vmatprep.subr.bf16.mxu0 0
    %564 = vmatpush2.bf16.msra.mxu0 0
    %565 = vmatprep.subr.bf16.mxu0 0
    %566 = vmatpush2.bf16.msra.mxu0 0
    %567 = vmatprep.subr.bf16.mxu0 0
    %568 = vmatpush2.bf16.msra.mxu0 0
    %569 = vmatprep.subr.bf16.mxu0 0
    %570 = vmatpush2.bf16.msra.mxu0 0
    %571 = vmatprep.subr.bf16.mxu0 0
    %572 = vmatpush2.bf16.msra.mxu0 0
    %573 = vmatprep.mubr.bf16.mxu0 0
    %574 = vmatmul.mubr.bf16.gmra.mxu0 %v539
    %v575 = vpop.f32.mrf.mxu0
    %v576 = vadd.f32 %v512, %v575
    %v577 = vpop.f32.mrf.mxu0
    %v578 = vpop.f32.mrf.mxu0
    %v579 = vadd.f32 %v512, %v578
    %v580 = vpop.f32.mrf.mxu0
    %581 = vdwg.mxu0
    %vm582 = vcmask 261120
    %v583 = vsel %vm582, %v576, 0.0
    %584 = vadd.xlane.f32.xlu0 %v583
    %v585 = vpop.xlane.xlu0 %584
    %v586 = vsel %vm582, %v579, 0.0
    %587 = vadd.xlane.f32.xlu0 %v586
    %v588 = vpop.xlane.xlu0 %587
    %v589 = vrcp.pop 32.0
    %v590 = vmul.f32 %v585, %v589
    %v591 = vmul.f32 %v588, %v589
    %v592 = vsub.f32 %v576, %v590
    %v593 = vsub.f32 %v579, %v591
    %v594 = vmul.f32 %v592, %v592
    %v595 = vmul.f32 %v593, %v593
    %v596 = vsel %vm582, %v594, 0.0
    %597 = vadd.xlane.f32.xlu0 %v596
    %v598 = vpop.xlane.xlu0 %597
    %v599 = vsel %vm582, %v595, 0.0
    %600 = vadd.xlane.f32.xlu0 %v599
    %v601 = vpop.xlane.xlu0 %600
    %v602 = vmul.f32 %v598, %v589
    %v603 = vmul.f32 %v601, %v589
    %v604 = vadd.f32 %v602, 1e-05
    %v605 = vadd.f32 %v603, 1e-05
    %v606 = vrsqrt.pop %v604
    %v607 = vrsqrt.pop %v605
    %v608 = vmul.f32 %v592, %v606
    %v609 = vmul.f32 %v593, %v607
    %v611 = vlaneseq
    %v612 = vshrl.u32 %v611, 7
    %v613 = vsub.s32 0, %v612
    %v614 = vrot.slane %v163, %v613
    %v616 = vmul.f32 %v608, %v614
    %v617 = vmul.f32 %v609, %v614
    %v619 = vlaneseq
    %v620 = vshrl.u32 %v619, 7
    %v621 = vsub.s32 0, %v620
    %v622 = vrot.slane %v164, %v621
    %v624 = vadd.f32 %v616, %v622
    %v625 = vadd.f32 %v617, %v622
    %v626 = vmax.f32 %v624, 0.0
    %v627 = vmax.f32 %v625, 0.0
    %v628 = vpack.c.bf16 %v627, %v626
    %v630 = vunpack.c.l.b16 %v628
    %v631 = vunpack.c.h.b16 %v628
    %v632 = vpack.c.b16 %v630, %v630
    %v633 = vpack.c.b16 %v631, %v631
    %vm636 = vcmask 257024
    %637 = vst.msk [vmem:[#allocation13] sm:$0xf] %vm636, %v632
    %638 = vst.msk [vmem:[#allocation13 + $0x4] sm:$0xf] %vm636, %v633
    // Predicated region
    $region94: #{tpu_custom_call.1} parent=1 // pred_check
      _
    $region95: #{tpu_custom_call.1} parent=1 // pred_check_branch
      %640 = sbr.rel (0) target = $region97
    $region96: #{tpu_custom_call.1} parent=1 // pred_region
      %s642 = ssub.s32 128, 128
      %643 = vsyncadd [#allocation4], %s642
      %s644 = sshll.u32 [#allocation13], 4
      %s645 = int_to_ptr.vmem [resolvable:$true] %s644
      %650 = dma.vmem_to_hbm [thread:$0]  %s645, 128, %s17, [#allocation4], 64, 64, 4
    $region97: #{tpu_custom_call.1} parent=1 // pred_fallthru
      _
    // Predicated region
    $region98: #{tpu_custom_call.1} parent=1 // pred_check
      _
    $region99: #{tpu_custom_call.1} parent=1 // pred_check_branch
      %652 = sbr.rel (0) target = $region101
    $region100: #{tpu_custom_call.1} parent=1 // pred_region
      %653 = dma.done [#allocation4], 128
    $region101: #{tpu_custom_call.1} parent=1 // pred_fallthru
      _
    %654 = vsyncpa [#allocation3], 1
    %655 = vsyncpa [#allocation6], 1
    %656 = vsyncpa [#allocation9], 1
    %657 = vsyncpa [#allocation12], 1
    %658 = vsyncpa [#allocation4], 1

</llo_original>
